<compile_context>
chip_gen: v7x
topology: tpu7x:2x2x1
jax: 0.10.0
libtpu: 0.0.40
codegen_flags: <defaults>
</compile_context>

<pallas_src>
import math

import jax
import jax.numpy as jnp
import numpy as np
from jax.experimental import pallas as pl
from jax.experimental.pallas import tpu as pltpu

INV_SQRT2 = 1.0 / math.sqrt(2.0)  # haar coefficient (pure-JAX reference only)


def _fused_kernel(x_ref, w_ref, shift_ref, o_ref):
    """One (batch, spatial-tile) block: y = clip(A @ x + shift, 0, 6).

    x_ref:     (Cin, TN)   channels (sublanes) x spatial positions (lanes)
    w_ref:     (Cout, Cin) folded DWT/conv/IDWT/BN-scale channel-mixing matrix
    shift_ref: (Cout, 1)   folded BN shift (f32)
    o_ref:     (Cout, TN)  lane-dense output tile
    """
    cout, cin = w_ref.shape
    tn = o_ref.shape[-1]
    shift = shift_ref[...].astype(jnp.float32)           # (Cout, 1)

    if cin > 16:
        # Larger channel counts: MXU contraction (bf16 operands feed straight in).
        xm, wm = x_ref[...], w_ref[...]
        if xm.dtype != wm.dtype:
            xm = xm.astype(jnp.float32)
            wm = wm.astype(jnp.float32)
        acc = jax.lax.dot_general(
            wm, xm, (((1,), (0,)), ((), ())),
            preferred_element_type=jnp.float32) + shift
        o_ref[...] = jnp.clip(acc, 0.0, 6.0).astype(o_ref.dtype)
        return

    # Tiny-K contraction: `cin` broadcast-FMAs on the VPU (a K=cin matmul would be
    # MXU fill/drain-latency bound).  Chunk the lane axis so the live (cout, chunk)
    # accumulator stays in vregs across the cin unroll instead of spilling to VMEM.
    w = w_ref[...].astype(jnp.float32)                    # (Cout, Cin), tiny

    chunk = tn
    if cout * tn > 16384:                                 # ~16 vregs of f32 accumulator
        chunk = 128
        cand = 256
        while cand <= tn and cout * cand <= 16384:
            if tn % cand == 0:
                chunk = cand
            cand += 128
    n_chunks = tn // chunk
    shift_b = jnp.broadcast_to(shift, (cout, chunk))      # hoisted (JAX won't CSE broadcasts)

    def do_chunk(start):
        xc = x_ref[:, pl.ds(start, chunk)].astype(jnp.float32)
        acc = shift_b
        for c in range(cin):                              # static unroll, cin <= 16
            acc = acc + w[:, c:c + 1] * xc[c:c + 1, :]
        o_ref[:, pl.ds(start, chunk)] = jnp.clip(acc, 0.0, 6.0).astype(o_ref.dtype)

    if n_chunks == 1:
        do_chunk(0)
    else:
        def body(j, carry):
            do_chunk(pl.multiple_of(j * chunk, 128))
            return carry
        jax.lax.fori_loop(0, n_chunks, body, 0)


def conv_bn_relu_1x1_br(x, conv_w, gamma, beta, run_mean, run_var,
                        eps=1e-5, max_spatial_tile=65536):
    """x: (B, C, W, H) NCHW like PyTorch. Returns (B, Cout, H, W) in x.dtype."""
    B, C, W, H = x.shape
    assert C % 2 == 0, "in_channel must be even"
    c_out_half, c_in_half = conv_w.shape[0], conv_w.shape[1]
    assert c_in_half == C // 2
    Cout = 2 * c_out_half
    assert gamma.shape == (Cout,)
    WH = W * H

    def rup(v, m):
        return -(-v // m) * m

    io_dtype = x.dtype
    itemsize = x.dtype.itemsize
    # Keep the weight in the streaming dtype when the producer already supplies bf16
    # (f32 accumulate in-kernel); otherwise everything stays f32.
    w_dtype = jnp.bfloat16 if io_dtype == jnp.bfloat16 else jnp.float32
    w_itemsize = 2 if w_dtype == jnp.bfloat16 else 4

    # ---- fold DWT('haar') -> 1x1 conv -> IDWT('haar') -> BN(eval) into one
    #      channel-mixing matrix A (Cout, C) and a per-channel shift (Cout, 1).
    w2 = conv_w.reshape(c_out_half, c_in_half).astype(jnp.float32)
    scale = (gamma / jnp.sqrt(run_var + eps)).astype(jnp.float32)        # (Cout,)
    shift = (beta - run_mean * scale).astype(jnp.float32)                # (Cout,)
    A = jnp.zeros((Cout, C), jnp.float32)
    A = A.at[0::2, 0::2].set(w2)      # even output channels read even input channels
    A = A.at[1::2, 1::2].set(w2)      # odd  output channels read odd  input channels
    A = (A * scale[:, None]).astype(w_dtype)   # BN scale folded into the weight rows
    shift = shift[:, None]                     # (Cout, 1) f32

    # ---- layout: NCHW -> (B, C, W*H) is a free contiguous view; spatial -> lanes.
    xr = x.reshape(B, C, WH)

    # ---- spatial tile: target ~2 MiB of x+y HBM traffic per grid step, capped by a
    #      per-generation VMEM budget (resident weight + double-buffered tiles +
    #      in-kernel f32 temps), always a multiple of 128 lanes.
    TARGET_STEP_BYTES = 2 * 1024 * 1024
    hbm_per_lane = (C + Cout) * itemsize
    tn_target = max(128, (TARGET_STEP_BYTES // hbm_per_lane) // 128 * 128)

    try:
        phys_vmem = int(getattr(pltpu.get_tpu_info(), "vmem_capacity_bytes",
                                64 * 1024 * 1024))
    except Exception:
        phys_vmem = 64 * 1024 * 1024
    data_budget = min(24 * 1024 * 1024, max(8 * 1024 * 1024, phys_vmem // 5))

    sub = 16 if itemsize == 2 else 8
    c_pad, cout_pad = rup(C, sub), rup(Cout, sub)
    # 2x double-buffered input + output blocks (sublane padded) + f32 in-kernel temps.
    vmem_per_lane = 2 * (c_pad + cout_pad) * itemsize + 4 * (rup(C, 8) + rup(Cout, 8))
    # Resident weight (lane-padded) + resident shift.
    fixed_vmem = (rup(Cout, 16 if w_itemsize == 2 else 8) * rup(C, 128) * w_itemsize
                  + rup(Cout, 8) * 128 * 4)
    tn_vmem = max(128, ((data_budget - fixed_vmem) // vmem_per_lane) // 128 * 128)

    wh_pad = rup(WH, 128)
    tn = min(tn_target, tn_vmem, max_spatial_tile, wh_pad)
    tn = max(128, tn // 128 * 128)

    MIN_STEPS = 8   # >= 4 grid steps per TensorCore on a 2-TC chip
    while tn > 128 and B * pl.cdiv(WH, tn) < MIN_STEPS:
        tn = max(128, (tn // 2) // 128 * 128)

    n_tiles = pl.cdiv(WH, tn)       # partial final tile handled by masked writeback DMA
    grid = (B, n_tiles)

    vmem_needed = fixed_vmem + vmem_per_lane * tn
    vmem_limit = int(min(max(vmem_needed + vmem_needed // 2 + (2 << 20), 16 << 20),
                         48 << 20))

    y = pl.pallas_call(
        _fused_kernel,
        grid=grid,
        in_specs=[
            pl.BlockSpec((None, C, tn), lambda b, j: (b, 0, j)),    # x tile (batch squeezed)
            pl.BlockSpec((Cout, C), lambda b, j: (0, 0)),           # resident folded weight
            pl.BlockSpec((Cout, 1), lambda b, j: (0, 0)),           # resident BN shift
        ],
        out_specs=pl.BlockSpec((None, Cout, tn), lambda b, j: (b, 0, j)),
        out_shape=jax.ShapeDtypeStruct((B, Cout, WH), io_dtype),
        compiler_params=pltpu.CompilerParams(
            dimension_semantics=("parallel", "parallel"),
            vmem_limit_bytes=vmem_limit),
    )(xr, A, shift)

    # ---- same view semantics as the PyTorch module's
    #      .view(B, H, W, Ctemp01).permute(0, 3, 1, 2): flat position index preserved.
    return y.reshape(B, Cout, H, W)


def reference(x, conv_w, gamma, beta, run_mean, run_var, eps=1e-5):
    """Pure-JAX mirror of the PyTorch forward (eval-mode BN), DWT/IDWT spelled out."""
    B, C, W, H = x.shape
    c_out_half = conv_w.shape[0]
    Cout = 2 * c_out_half
    xs = jnp.transpose(x, (0, 2, 3, 1)).reshape(B, W * H, C)
    low = (xs[..., 0::2] + xs[..., 1::2]) * INV_SQRT2
    high = (xs[..., 0::2] - xs[..., 1::2]) * INV_SQRT2
    w2 = conv_w.reshape(c_out_half, C // 2)
    low_o = jnp.einsum("bnc,oc->bno", low, w2)
    high_o = jnp.einsum("bnc,oc->bno", high, w2)
    ye = (low_o + high_o) * INV_SQRT2
    yo = (low_o - high_o) * INV_SQRT2
    y = jnp.stack([ye, yo], axis=-1).reshape(B, W * H, Cout)
    y = jnp.transpose(y.reshape(B, H, W, Cout), (0, 3, 1, 2))
    y = (y - run_mean[None, :, None, None]) / jnp.sqrt(run_var + eps)[None, :, None, None]
    y = y * gamma[None, :, None, None] + beta[None, :, None, None]
    return jnp.clip(y, 0.0, 6.0)


if __name__ == "__main__":
    # module config: in_channel=4, out_channel=8, stride=1 (the only stride for
    # which the internal view()s are valid), padding=0, groups=1, bias=False
    B, C_in, W, H = 2, 4, 16, 16
    C_out = 8

    key = jax.random.PRNGKey(0)
    kx, kw, kg, kb, km, kv = jax.random.split(key, 6)

    x = jax.random.normal(kx, (B, C_in, W, H), dtype=jnp.float32)
    # conv_1x1 weight: (out_channel//2, in_channel//2, 1, 1), no bias
    conv_w = jax.random.normal(kw, (C_out // 2, C_in // 2, 1, 1), dtype=jnp.float32) * 0.5
    # BatchNorm2d(out_channel) parameters (deterministic, eval-mode)
    gamma = 1.0 + 0.1 * jax.random.normal(kg, (C_out,), dtype=jnp.float32)
    beta = 0.1 * jax.random.normal(kb, (C_out,), dtype=jnp.float32)
    run_mean = 0.1 * jax.random.normal(km, (C_out,), dtype=jnp.float32)
    run_var = 1.0 + 0.1 * jnp.abs(jax.random.normal(kv, (C_out,), dtype=jnp.float32))

    out = conv_bn_relu_1x1_br(x, conv_w, gamma, beta, run_mean, run_var)
    out = jax.block_until_ready(out)

    ref = jax.block_until_ready(reference(x, conv_w, gamma, beta, run_mean, run_var))
    assert out.shape == (B, C_out, H, W), out.shape
    np.testing.assert_allclose(np.asarray(out), np.asarray(ref), rtol=1e-5, atol=1e-5)

    print("KERNEL_OK")
</pallas_src>

<mosaic_0001>
module attributes {stable_mosaic.version = 11 : i64} {
  func.func @_fused_kernel(%arg0: i32, %arg1: i32, %arg2: memref<1x4x128xf32, #tpu.memory_space<vmem>>, %arg3: memref<8x4xf32, #tpu.memory_space<vmem>>, %arg4: memref<8x1xf32, #tpu.memory_space<vmem>>, %arg5: memref<1x8x128xf32, #tpu.memory_space<vmem>>) attributes {dimension_semantics = [#tpu.dimension_semantics<parallel>, #tpu.dimension_semantics<parallel>], iteration_bounds = array<i64: 2, 2>, scalar_prefetch = 0 : i64, scratch_operands = 0 : i64, tpu.core_type = #tpu.core_type<tc>, window_params = [{transform_indices = @transform_0, window_bounds = array<i64: 1, 4, 128>}, {pipeline_mode = #tpu.pipeline_mode<synchronous>, transform_indices = @transform_1, window_bounds = array<i64: 8, 4>}, {pipeline_mode = #tpu.pipeline_mode<synchronous>, transform_indices = @transform_2, window_bounds = array<i64: 8, 1>}, {transform_indices = @transform_3, window_bounds = array<i64: 1, 8, 128>}]} {
    %c0 = arith.constant 0 : index
    %c0_0 = arith.constant 0 : index
    %0 = vector.load %arg4[%c0, %c0_0] : memref<8x1xf32, #tpu.memory_space<vmem>>, vector<8x1xf32>
    %c0_1 = arith.constant 0 : index
    %c0_2 = arith.constant 0 : index
    %1 = vector.load %arg3[%c0_1, %c0_2] : memref<8x4xf32, #tpu.memory_space<vmem>>, vector<8x4xf32>
    %2 = vector.shape_cast %0 : vector<8x1xf32> to vector<8x1xf32>
    %3 = vector.broadcast %2 : vector<8x1xf32> to vector<8x128xf32>
    %c0_3 = arith.constant 0 : index
    %c0_4 = arith.constant 0 : index
    %c0_5 = arith.constant 0 : index
    %4 = vector.load %arg2[%c0_3, %c0_4, %c0_5] : memref<1x4x128xf32, #tpu.memory_space<vmem>>, vector<1x4x128xf32>
    %5 = vector.shape_cast %4 : vector<1x4x128xf32> to vector<4x128xf32>
    %6 = vector.extract_strided_slice %1 {offsets = [0, 0], sizes = [8, 1], strides = [1, 1]} : vector<8x4xf32> to vector<8x1xf32>
    %7 = vector.extract_strided_slice %5 {offsets = [0, 0], sizes = [1, 128], strides = [1, 1]} : vector<4x128xf32> to vector<1x128xf32>
    %8 = vector.broadcast %6 : vector<8x1xf32> to vector<8x128xf32>
    %9 = vector.broadcast %7 : vector<1x128xf32> to vector<8x128xf32>
    %10 = arith.mulf %8, %9 : vector<8x128xf32>
    %11 = arith.addf %3, %10 : vector<8x128xf32>
    %12 = vector.extract_strided_slice %1 {offsets = [0, 1], sizes = [8, 1], strides = [1, 1]} : vector<8x4xf32> to vector<8x1xf32>
    %13 = vector.extract_strided_slice %5 {offsets = [1, 0], sizes = [1, 128], strides = [1, 1]} : vector<4x128xf32> to vector<1x128xf32>
    %14 = vector.broadcast %12 : vector<8x1xf32> to vector<8x128xf32>
    %15 = vector.broadcast %13 : vector<1x128xf32> to vector<8x128xf32>
    %16 = arith.mulf %14, %15 : vector<8x128xf32>
    %17 = arith.addf %11, %16 : vector<8x128xf32>
    %18 = vector.extract_strided_slice %1 {offsets = [0, 2], sizes = [8, 1], strides = [1, 1]} : vector<8x4xf32> to vector<8x1xf32>
    %19 = vector.extract_strided_slice %5 {offsets = [2, 0], sizes = [1, 128], strides = [1, 1]} : vector<4x128xf32> to vector<1x128xf32>
    %20 = vector.broadcast %18 : vector<8x1xf32> to vector<8x128xf32>
    %21 = vector.broadcast %19 : vector<1x128xf32> to vector<8x128xf32>
    %22 = arith.mulf %20, %21 : vector<8x128xf32>
    %23 = arith.addf %17, %22 : vector<8x128xf32>
    %24 = vector.extract_strided_slice %1 {offsets = [0, 3], sizes = [8, 1], strides = [1, 1]} : vector<8x4xf32> to vector<8x1xf32>
    %25 = vector.extract_strided_slice %5 {offsets = [3, 0], sizes = [1, 128], strides = [1, 1]} : vector<4x128xf32> to vector<1x128xf32>
    %26 = vector.broadcast %24 : vector<8x1xf32> to vector<8x128xf32>
    %27 = vector.broadcast %25 : vector<1x128xf32> to vector<8x128xf32>
    %28 = arith.mulf %26, %27 : vector<8x128xf32>
    %29 = arith.addf %23, %28 : vector<8x128xf32>
    %cst = arith.constant 0.000000e+00 : f32
    %cst_6 = arith.constant 6.000000e+00 : f32
    %30 = vector.broadcast %cst : f32 to vector<8x128xf32>
    %31 = arith.maximumf %30, %29 : vector<8x128xf32>
    %32 = vector.broadcast %cst_6 : f32 to vector<8x128xf32>
    %33 = arith.minimumf %32, %31 : vector<8x128xf32>
    %c0_7 = arith.constant 0 : index
    %c0_8 = arith.constant 0 : index
    %c0_9 = arith.constant 0 : index
    %34 = vector.load %arg5[%c0_7, %c0_8, %c0_9] : memref<1x8x128xf32, #tpu.memory_space<vmem>>, vector<1x8x128xf32>
    %35 = vector.shape_cast %34 : vector<1x8x128xf32> to vector<8x128xf32>
    %36 = vector.shape_cast %33 : vector<8x128xf32> to vector<1x8x128xf32>
    tpu.vector_store %arg5[%c0_7, %c0_8, %c0_9], %36 {strides = array<i32>} : memref<1x8x128xf32, #tpu.memory_space<vmem>>, vector<1x8x128xf32>,
    return
  }
  func.func @transform_0(%arg0: i32, %arg1: i32) -> (i32, i32, i32) {
    %c0_i32 = arith.constant 0 : i32
    %c0_i32_0 = arith.constant 0 : i32
    return %arg0, %c0_i32, %arg1 : i32, i32, i32
  }
  func.func @transform_1(%arg0: i32, %arg1: i32) -> (i32, i32) {
    %c0_i32 = arith.constant 0 : i32
    %c0_i32_0 = arith.constant 0 : i32
    %c0_i32_1 = arith.constant 0 : i32
    return %c0_i32, %c0_i32_0 : i32, i32
  }
  func.func @transform_2(%arg0: i32, %arg1: i32) -> (i32, i32) {
    %c0_i32 = arith.constant 0 : i32
    %c0_i32_0 = arith.constant 0 : i32
    %c0_i32_1 = arith.constant 0 : i32
    return %c0_i32, %c0_i32_0 : i32, i32
  }
  func.func @transform_3(%arg0: i32, %arg1: i32) -> (i32, i32, i32) {
    %c0_i32 = arith.constant 0 : i32
    %c0_i32_0 = arith.constant 0 : i32
    return %arg0, %c0_i32, %arg1 : i32, i32, i32
  }
}

</mosaic_0001>

<llo_original>
// kernel: tpu_custom_call.1
$region0: #{tpu_custom_call.1}
  #allocation0 [shape = 'u32[]', space=smem, size = 0x4, offset = 0x4, fixed_abs, tag = 'smem constant byte address 0x4 - core index']
  #allocation1 [shape = 'u32[144,128]{1,0:T(1,128)}', space=vmem, size = 0x12000, scoped, tag = 'internal scratch']
  %s0 = inlined_call_operand.vmem [shape: f32[2,4,256], index: 0, kind: input, shape index: {}]
  %s1 = inlined_call_operand.vmem [shape: f32[8,4], index: 1, kind: input, shape index: {}]
  %s2 = inlined_call_operand.vmem [shape: f32[8,1], index: 2, kind: input, shape index: {}]
  %s3 = inlined_call_operand.hbm [shape: f32[2,8,256], index: 3, kind: output, shape index: {}]
  %s4 = sld [smem:[#allocation0]]
  $region45: #{tpu_custom_call.1} parent=0
    _
  %s6 = ssub.s32 1, %s4
  %s7 = scalar_select 0, %s6, %s4
  $region1: #{tpu_custom_call.1} parent=0
    #allocation2 [shape = 'u8[8192]{0}', space=vmem, size = 0x2000, scoped, tag = 'output window, operand 0']
    #allocation3 [shape = 's32[2]{0}', space=sflag, size = 0x8, scoped, tag = 'scoped memory for tpu_custom_call.1']
    %8 = vsyncpa [#allocation3], 0
    %s9 = scalar_lea.sflag [#allocation3], 1
    %10 = vsyncpa %s9, 0
    loop: start=0, step=1, limit=6
    $region2: #{tpu_custom_call.1} parent=1 // loop_pre_header
      _
    $region3: #{tpu_custom_call.1} parent=1 // loop_header
      %s12 = sphi 0, %s16
      %p13 = scmp.ge.s32.totalorder %s12, 6
      %s19 = sphi 0, %s31
      %s20 = sphi 0, %s27
      %s21 = sphi 0, %s19
      %s22 = sphi 0, %s20
      %s23 = sphi 0, %s21
      %s24 = sphi 0, %s22
      %s36 = sphi 0, %s38
      %s39 = sphi 0, %s36
      %s40 = sphi 0, %s39
      %s56 = sphi 0, %s40
      %s60 = sphi 0, %s60
      %s62 = sphi 0, %s60
      %s63 = sphi 0, %s62
      %s77 = sphi 0, %s63
      %s81 = sphi 0, %s81
      %s83 = sphi 0, %s81
      %s84 = sphi 0, %s83
      %s98 = sphi 0, %s84
      %s106 = sphi 0, %s108
      %s109 = sphi 0, %s106
      %s110 = sphi 0, %s109
      %s126 = sphi 0, %s110
    $region4: #{tpu_custom_call.1} parent=1 // loop_header_branch
      %15 = sbr.rel (%p13) target = $region8
    $region5: #{tpu_custom_call.1} parent=1 // loop_body
      %s17 = ssub.s32 %s12, 1
      %s18 = ssub.s32 %s12, 2
      %s25 = sadd.s32 1, %s20
      %p26 = scmp.ge.s32.totalorder %s25, 2
      %s27 = scalar_select %p26, 0, %s25
      %s28 = sadd.s32 1, %s19
      %s29 = scalar_select %p26, %s28, %s19
      %p30 = scmp.ge.s32.totalorder %s29, 2
      %s31 = scalar_select %p30, 0, %s29
      %s32 = ssub.s32 %s19, %s31
      %s33 = ssub.s32 %s20, %s27
      %s34 = sor.u32 %s32, %s33
      %p35 = scmp.eq.s32.totalorder %s34, 0
      %s37 = sadd.s32 %s36, 1
      %s38 = scalar_select %p35, %s36, %s37
      %p41 = pneg %p35
      %p42 = scmp.eq.s32.totalorder %s12, 3
      %p43 = por %p41, %p42
      %p44 = scmp.ne.s32.totalorder %s36, %s39
      %p45 = scmp.eq.s32.totalorder %s12, 0
      %p46 = por %p44, %p45
      %p47 = scmp.ne.s32.totalorder %s36, %s39
      %p48 = scmp.eq.s32.totalorder %s17, 3
      %p49 = por %p47, %p48
      %p50 = scmp.ne.s32.totalorder %s39, %s40
      %p51 = scmp.eq.s32.totalorder %s17, 0
      %p52 = por %p50, %p51
      %p53 = scmp.ne.s32.totalorder %s39, %s40
      %p54 = scmp.eq.s32.totalorder %s18, 3
      %p55 = por %p53, %p54
      %p57 = scmp.ne.s32.totalorder %s40, %s56
      %p58 = scmp.eq.s32.totalorder %s18, 0
      %p59 = por %p57, %p58
      %s61 = sadd.s32 %s60, 1
      %p64 = scmp.eq.s32.totalorder %s12, 3
      %p65 = scmp.ne.s32.totalorder %s60, %s62
      %p66 = scmp.eq.s32.totalorder %s12, 0
      %p67 = por %p65, %p66
      %p68 = scmp.ne.s32.totalorder %s60, %s62
      %p69 = scmp.eq.s32.totalorder %s17, 3
      %p70 = por %p68, %p69
      %p71 = scmp.ne.s32.totalorder %s62, %s63
      %p72 = scmp.eq.s32.totalorder %s17, 0
      %p73 = por %p71, %p72
      %p74 = scmp.ne.s32.totalorder %s62, %s63
      %p75 = scmp.eq.s32.totalorder %s18, 3
      %p76 = por %p74, %p75
      %p78 = scmp.ne.s32.totalorder %s63, %s77
      %p79 = scmp.eq.s32.totalorder %s18, 0
      %p80 = por %p78, %p79
      %s82 = sadd.s32 %s81, 1
      %p85 = scmp.eq.s32.totalorder %s12, 3
      %p86 = scmp.ne.s32.totalorder %s81, %s83
      %p87 = scmp.eq.s32.totalorder %s12, 0
      %p88 = por %p86, %p87
      %p89 = scmp.ne.s32.totalorder %s81, %s83
      %p90 = scmp.eq.s32.totalorder %s17, 3
      %p91 = por %p89, %p90
      %p92 = scmp.ne.s32.totalorder %s83, %s84
      %p93 = scmp.eq.s32.totalorder %s17, 0
      %p94 = por %p92, %p93
      %p95 = scmp.ne.s32.totalorder %s83, %s84
      %p96 = scmp.eq.s32.totalorder %s18, 3
      %p97 = por %p95, %p96
      %p99 = scmp.ne.s32.totalorder %s84, %s98
      %p100 = scmp.eq.s32.totalorder %s18, 0
      %p101 = por %p99, %p100
      %s102 = ssub.s32 %s19, %s31
      %s103 = ssub.s32 %s20, %s27
      %s104 = sor.u32 %s102, %s103
      %p105 = scmp.eq.s32.totalorder %s104, 0
      %s107 = sadd.s32 %s106, 1
      %s108 = scalar_select %p105, %s106, %s107
      %p111 = pneg %p105
      %p112 = scmp.eq.s32.totalorder %s12, 3
      %p113 = por %p111, %p112
      %p114 = scmp.ne.s32.totalorder %s106, %s109
      %p115 = scmp.eq.s32.totalorder %s12, 0
      %p116 = por %p114, %p115
      %p117 = scmp.ne.s32.totalorder %s106, %s109
      %p118 = scmp.eq.s32.totalorder %s17, 3
      %p119 = por %p117, %p118
      %p120 = scmp.ne.s32.totalorder %s109, %s110
      %p121 = scmp.eq.s32.totalorder %s17, 0
      %p122 = por %p120, %p121
      %p123 = scmp.ne.s32.totalorder %s109, %s110
      %p124 = scmp.eq.s32.totalorder %s18, 3
      %p125 = por %p123, %p124
      %p127 = scmp.ne.s32.totalorder %s110, %s126
      %p128 = scmp.eq.s32.totalorder %s18, 0
      %p129 = por %p127, %p128
      %p130 = scmp.le.s32.totalorder 1, %s12
      %p131 = scmp.lt.s32.totalorder %s12, 5
      %p132 = pnand %p130, %p131
      %p133 = pneg %p132
      // Predicated region
      $region9: #{tpu_custom_call.1} parent=5 // pred_check
        _
      $region10: #{tpu_custom_call.1} parent=5 // pred_check_branch
        %135 = sbr.rel (%p132) target = $region12
      $region11: #{tpu_custom_call.1} parent=5 // pred_region
        %s136 = ssub.s32 %s12, 1
        // Predicated region
        $region13: #{tpu_custom_call.1} parent=11 // pred_check
          %p137 = pneg %p73
        $region14: #{tpu_custom_call.1} parent=11 // pred_check_branch
          %139 = sbr.rel (%p137) target = $region16
        $region15: #{tpu_custom_call.1} parent=11 // pred_region
          _
        $region16: #{tpu_custom_call.1} parent=11 // pred_fallthru
          _
        // Predicated region
        $region17: #{tpu_custom_call.1} parent=11 // pred_check
          %p140 = pneg %p94
        $region18: #{tpu_custom_call.1} parent=11 // pred_check_branch
          %142 = sbr.rel (%p140) target = $region20
        $region19: #{tpu_custom_call.1} parent=11 // pred_region
          _
        $region20: #{tpu_custom_call.1} parent=11 // pred_fallthru
          _
      $region12: #{tpu_custom_call.1} parent=5 // pred_fallthru
        _
      %p143 = scmp.lt.s32.totalorder %s12, 4
      // Predicated region
      $region21: #{tpu_custom_call.1} parent=5 // pred_check
        %p144 = pneg %p143
      $region22: #{tpu_custom_call.1} parent=5 // pred_check_branch
        %146 = sbr.rel (%p144) target = $region24
      $region23: #{tpu_custom_call.1} parent=5 // pred_region
        // Predicated region
        $region25: #{tpu_custom_call.1} parent=23 // pred_check
          %p147 = pneg %p46
        $region26: #{tpu_custom_call.1} parent=23 // pred_check_branch
          %149 = sbr.rel (%p147) target = $region28
        $region27: #{tpu_custom_call.1} parent=23 // pred_region
          %p150 = scmp.lt.s32.totalorder %s19, 1
          %s151 = scalar_select %p150, %s19, 1
          %p152 = scmp.lt.s32.totalorder %s20, 1
          %s153 = scalar_select %p152, %s20, 1
          %s154 = smul.addr %s151, 2
          %s155 = sadd.s32 %s153, %s154
          %s156 = smul.addr %s155, 4
          %s157 = scalar_lea.vmem %s0, %s156
        $region28: #{tpu_custom_call.1} parent=23 // pred_fallthru
          _
      $region24: #{tpu_custom_call.1} parent=5 // pred_fallthru
        _
      %p158 = scmp.le.s32.totalorder 1, %s12
      %p159 = scmp.lt.s32.totalorder %s12, 5
      %p160 = pnand %p158, %p159
      %p161 = pneg %p160
      // Predicated region
      $region29: #{tpu_custom_call.1} parent=5 // pred_check
        _
      $region30: #{tpu_custom_call.1} parent=5 // pred_check_branch
        %163 = sbr.rel (%p160) target = $region32
      $region31: #{tpu_custom_call.1} parent=5 // pred_region
        %s164 = ssub.s32 %s12, 1
        %p165 = scmp.lt.s32.totalorder %s21, 1
        %s166 = scalar_select %p165, %s21, 1
        %p167 = scmp.lt.s32.totalorder %s22, 1
        %s168 = scalar_select %p167, %s22, 1
        %s169 = smul.addr %s166, 2
        %s170 = sadd.s32 %s168, %s169
        %s171 = smul.addr %s170, 4
        %s172 = scalar_lea.vmem %s0, %s171
        %p173 = pneg %p52
        %p174 = pneg %p49
        %p175 = pneg %p73
        %p176 = pneg %p70
        %p177 = pneg %p94
        %p178 = pneg %p91
        %p179 = pneg %p122
        %p180 = pneg %p119
        %s181 = sand.u32 %s109, 1
        %s182 = scalar_lea.sflag [#allocation3], %s181
        %s183 = sand.u32 %s109, 1
        %s184 = smul.addr %s183, 8
        %s185 = scalar_lea.vmem [#allocation2], %s184
        %p186 = scmp.lt.s32.totalorder %s21, 1
        %s187 = scalar_select %p186, %s21, 1
        %p188 = scmp.lt.s32.totalorder %s22, 1
        %s189 = scalar_select %p188, %s22, 1
        %s190 = smul.addr %s187, 2
        %s191 = sadd.s32 %s189, %s190
        %s192 = smul.addr %s191, 4
        %s193 = scalar_lea.vmem %s0, %s192
        %v194 = vld [vmem:[%s2] sm:$0xff]
        %v195 = vld [vmem:[%s1] sm:$0xff]
        %197 = vset.pattern.permute.xlu0 0
        %198 = vperm.xlu0 %197, %v194
        %v199 = vpop.permute.xlu0 %198
        %v201 = vld [vmem:[%s193] sm:$0xf]
        %203 = vset.pattern.permute.xlu0 0
        %204 = vperm.xlu0 %203, %v195
        %v205 = vpop.permute.xlu0 %204
        %v207 = vlaneseq
        %v208 = vshrl.u32 %v207, 7
        %v209 = vsub.s32 0, %v208
        %v210 = vrot.slane %v201, %v209
        %v211 = vmul.f32 %v205, %v210
        %v212 = vadd.f32 %v199, %v211
        %213 = vset.pattern.permute.xlu0 1
        %214 = vperm.xlu0 %213, %v195
        %v215 = vpop.permute.xlu0 %214
        %v217 = vlaneseq
        %v218 = vshrl.u32 %v217, 7
        %v219 = vsub.s32 1, %v218
        %v220 = vrot.slane %v201, %v219
        %v221 = vmul.f32 %v215, %v220
        %v222 = vadd.f32 %v212, %v221
        %223 = vset.pattern.permute.xlu0 2
        %224 = vperm.xlu0 %223, %v195
        %v225 = vpop.permute.xlu0 %224
        %v227 = vlaneseq
        %v228 = vshrl.u32 %v227, 7
        %v229 = vsub.s32 2, %v228
        %v230 = vrot.slane %v201, %v229
        %v231 = vmul.f32 %v225, %v230
        %v232 = vadd.f32 %v222, %v231
        %233 = vset.pattern.permute.xlu0 3
        %234 = vperm.xlu0 %233, %v195
        %v235 = vpop.permute.xlu0 %234
        %v237 = vlaneseq
        %v238 = vshrl.u32 %v237, 7
        %v239 = vsub.s32 3, %v238
        %v240 = vrot.slane %v201, %v239
        %v241 = vmul.f32 %v235, %v240
        %v242 = vadd.f32 %v232, %v241
        %v243 = vmax.f32 %v242, 0.0
        %v244 = vmin.f32 %v243, 6.0
        %245 = vst [vmem:[%s185] sm:$0xff] %v244
        %s246 = sand.u32 %s109, 1
        %s247 = scalar_lea.sflag [#allocation3], %s246
        %s248 = sand.u32 %s109, 1
        %s249 = smul.addr %s248, 8
        %s250 = scalar_lea.vmem [#allocation2], %s249
        // Predicated region
        $region33: #{tpu_custom_call.1} parent=31 // pred_check
          %p251 = pneg %p119
        $region34: #{tpu_custom_call.1} parent=31 // pred_check_branch
          %253 = sbr.rel (%p251) target = $region36
        $region35: #{tpu_custom_call.1} parent=31 // pred_region
          %s255 = ssub.s32 128, 128
          %256 = vsyncadd %s247, %s255
          %s257 = smul.addr %s21, 2
          %s258 = sadd.s32 %s22, %s257
          %s259 = smul.addr %s258, 128
          %s260 = scalar_lea.hbm %s3, %s259
          %s262 = sshll.u32 %s250, 4
          %s263 = int_to_ptr.vmem [resolvable:$true] %s262
          %265 = dma.vmem_to_hbm [thread:$0]  %s263, 128, %s260, %s247
        $region36: #{tpu_custom_call.1} parent=31 // pred_fallthru
          _
      $region32: #{tpu_custom_call.1} parent=5 // pred_fallthru
        _
      %p266 = scmp.le.s32.totalorder 2, %s12
      // Predicated region
      $region37: #{tpu_custom_call.1} parent=5 // pred_check
        %p267 = pneg %p266
      $region38: #{tpu_custom_call.1} parent=5 // pred_check_branch
        %269 = sbr.rel (%p267) target = $region40
      $region39: #{tpu_custom_call.1} parent=5 // pred_region
        %s270 = ssub.s32 %s12, 2
        // Predicated region
        $region41: #{tpu_custom_call.1} parent=39 // pred_check
          %p271 = pneg %p125
        $region42: #{tpu_custom_call.1} parent=39 // pred_check_branch
          %273 = sbr.rel (%p271) target = $region44
        $region43: #{tpu_custom_call.1} parent=39 // pred_region
          %s274 = sand.u32 %s110, 1
          %s275 = scalar_lea.sflag [#allocation3], %s274
          %s276 = sand.u32 %s110, 1
          %s277 = smul.addr %s276, 8
          %s278 = scalar_lea.vmem [#allocation2], %s277
          %279 = dma.done %s275, 128
        $region44: #{tpu_custom_call.1} parent=39 // pred_fallthru
          _
      $region40: #{tpu_custom_call.1} parent=5 // pred_fallthru
        _
    $region6: #{tpu_custom_call.1} parent=1 // loop_footer
      %s16 = sadd.s32 1, %s12
    $region7: #{tpu_custom_call.1} parent=1 // loop_footer_branch
      %11 = sbr.rel target = $region3
    $region8: #{tpu_custom_call.1} parent=1 // loop_exit
      _
    %280 = vsyncpa [#allocation3], 1
    %s281 = scalar_lea.sflag [#allocation3], 1
    %282 = vsyncpa %s281, 1

</llo_original>
